<compile_context>
chip_gen: v6e
topology: v6e:2x2x1
jax: 0.10.0
libtpu: 0.0.40
codegen_flags: <defaults>
</compile_context>

<pallas_src>
import functools

import jax
import jax.numpy as jnp
from jax.experimental import pallas as pl
from jax.experimental.pallas import tpu as pltpu

LANES = 128
MAX_BLOCK_ROWS = 4096  # (4096, 128) f32 = 2 MiB per pipeline buffer


def _focal_loss_kernel(logits_ref, target_ref, out_ref, *, alpha, gamma):
    # Compute in f32 regardless of input dtype (v5e has no bf16 VPU/EUP and
    # f32 math keeps the result tight on every generation).
    x = logits_ref[...].astype(jnp.float32)
    t = target_ref[...].astype(jnp.float32)

    # Shared transcendental chain:
    #   e        = exp(-|x|)                         (1 EUP exp)
    #   log1p(e) -> softplus term of the stable BCE  (1 EUP log1p)
    #   sigmoid(x) = where(x >= 0, 1, e) / (1 + e)   (exact divide: free under
    #                                                 the HBM bound, and keeps
    #                                                 pt**gamma accurate)
    e = jnp.exp(-jnp.abs(x))
    log1p_e = jnp.log1p(e)
    pred = jnp.where(x >= 0.0, 1.0, e) / (1.0 + e)

    # binary_cross_entropy_with_logits(x, t, reduction='none'), stable form:
    #   max(x, 0) - x*t + log1p(exp(-|x|))
    ce = jnp.maximum(x, 0.0) - x * t + log1p_e

    # alpha weighting
    a = t * alpha + (1.0 - t) * (1.0 - alpha)

    # pt = where(target == 1, pred, 1 - pred)   (matches the PyTorch reference)
    pt = jnp.where(t == 1.0, pred, 1.0 - pred)
    one_minus_pt = 1.0 - pt

    # (1 - pt) ** gamma: repeated multiply for small integer gamma (cheap VPU
    # ops, avoids the exp/log pow lowering and its 0 ** gamma edge case).
    g = float(gamma)
    if g == 0.0:
        w = jnp.ones_like(one_minus_pt)
    elif g == float(int(g)) and 0 < int(g) <= 8:
        w = one_minus_pt
        for _ in range(int(g) - 1):
            w = w * one_minus_pt
    else:
        # Non-integer gamma: fall back to pow.
        w = jnp.power(jnp.maximum(one_minus_pt, 0.0), g)

    out_ref[...] = (a * w * ce).astype(out_ref.dtype)


def _choose_block_rows(rows):
    """Pick the row-block size.

    Goals: (a) big blocks (>= 0.5-2 MiB/buffer) so the 0.35 us/step pipeline
    overhead is amortized, (b) at least 2 grid steps whenever rows > 8 so the
    'parallel' grid axis can be sharded across both TensorCores on v7x,
    (c) multiple of 8 sublanes unless the block spans the whole array.
    """
    if rows <= 8:
        return rows  # full-extent block, grid = (1,)
    half = -(-rows // 2)                      # cdiv(rows, 2)
    half_aligned = min(((half + 7) // 8) * 8, rows - (rows % 8 if rows % 8 else 8))
    # Simpler/safer: round half up to a multiple of 8 and make sure the block
    # is strictly smaller than rows only if that keeps >= 2 steps.
    half_aligned = ((half + 7) // 8) * 8
    block = min(MAX_BLOCK_ROWS, half_aligned)
    # block is a multiple of 8 and block < rows whenever rows > 8, so the
    # (8, 128) divisibility constraint is satisfied and grid >= 2.
    return block


def focal_loss(pred_logits, target, depth=None, *, alpha=0.25, gamma=2.0):
    """Elementwise focal loss, matching the PyTorch FocalLoss.forward.

    `depth` is unused (as in the reference module).
    """
    assert pred_logits.shape == target.shape
    orig_shape = pred_logits.shape
    out_dtype = pred_logits.dtype

    # Flatten to a lane-dense (rows, 128) slab. reshape(-1) is a free view;
    # padding (a real copy) only happens when n % 128 != 0.
    x = pred_logits.reshape(-1)
    t = target.reshape(-1)
    n = x.shape[0]
    pad = (-n) % LANES
    if pad:
        # TODO(synk): for n % 128 != 0 this pad + final slice each copy the
        # flattened tensor; a tail-split path would avoid the extra HBM traffic.
        x = jnp.pad(x, (0, pad))
        t = jnp.pad(t, (0, pad))
    rows = (n + pad) // LANES
    x2 = x.reshape(rows, LANES)
    t2 = t.reshape(rows, LANES)

    block_rows = _choose_block_rows(rows)
    grid = (pl.cdiv(rows, block_rows),)

    kernel = functools.partial(
        _focal_loss_kernel, alpha=float(alpha), gamma=float(gamma)
    )

    total = rows * LANES
    in_bytes = x2.size * x2.dtype.itemsize + t2.size * t2.dtype.itemsize
    out_bytes = total * jnp.dtype(out_dtype).itemsize
    cost = pl.CostEstimate(
        flops=20 * total,            # VPU elementwise chain per element
        transcendentals=2 * total,   # exp + log1p per element
        bytes_accessed=in_bytes + out_bytes,
    )

    out2 = pl.pallas_call(
        kernel,
        out_shape=jax.ShapeDtypeStruct((rows, LANES), out_dtype),
        grid_spec=pltpu.PrefetchScalarGridSpec(
            num_scalar_prefetch=0,
            grid=grid,
            in_specs=[
                pl.BlockSpec((block_rows, LANES), lambda i: (i, 0)),
                pl.BlockSpec((block_rows, LANES), lambda i: (i, 0)),
            ],
            out_specs=pl.BlockSpec((block_rows, LANES), lambda i: (i, 0)),
        ),
        compiler_params=pltpu.CompilerParams(
            dimension_semantics=("parallel",)  # megacore-shardable row grid
        ),
        cost_estimate=cost,
    )(x2, t2)

    if pad:
        out = out2.reshape(-1)[:n].reshape(orig_shape)
    else:
        out = out2.reshape(orig_shape)
    return out


def _reference(pred_logits, target, alpha=0.25, gamma=2.0):
    # Pure-JAX reference mirroring the PyTorch semantics.
    x = pred_logits.astype(jnp.float32)
    t = target.astype(jnp.float32)
    pred = jax.nn.sigmoid(x)
    ce = jnp.maximum(x, 0.0) - x * t + jnp.log1p(jnp.exp(-jnp.abs(x)))
    a = t * alpha + (1.0 - t) * (1.0 - alpha)
    pt = jnp.where(t == 1.0, pred, 1.0 - pred)
    return (a * (1.0 - pt) ** gamma * ce).astype(pred_logits.dtype)


if __name__ == "__main__":
    key = jax.random.PRNGKey(0)
    k1, k2, k3, k4 = jax.random.split(key, 4)

    # NCHW-style logits: (batch=2, channels=4, H=16, W=16)
    shape = (2, 4, 16, 16)
    pred_logits = jax.random.normal(k1, shape, dtype=jnp.float32) * 2.0
    # target is a 0/1 label map (same shape, as in dense detection heads)
    target = (jax.random.uniform(k2, shape) > 0.8).astype(jnp.float32)
    depth = None  # unused by the module

    out = focal_loss(pred_logits, target, depth, alpha=0.25, gamma=2.0)
    out = jax.block_until_ready(out)
    ref = _reference(pred_logits, target, alpha=0.25, gamma=2.0)
    assert out.shape == shape
    # Exact-f32 math in the kernel (no approx reciprocal) -> tight tolerance.
    assert jnp.allclose(out, ref, atol=1e-6, rtol=1e-5), "mismatch vs reference"

    # Second check exercising the multi-block (grid > 1) path.
    shape2 = (4, 16, 64, 64)
    logits2 = jax.random.normal(k3, shape2, dtype=jnp.float32) * 3.0
    target2 = (jax.random.uniform(k4, shape2) > 0.9).astype(jnp.float32)
    out2 = jax.block_until_ready(focal_loss(logits2, target2, depth))
    ref2 = _reference(logits2, target2)
    assert out2.shape == shape2
    assert jnp.allclose(out2, ref2, atol=1e-6, rtol=1e-5), "mismatch (large)"

    print("KERNEL_OK")
</pallas_src>

<mosaic_0001>
module attributes {stable_mosaic.version = 11 : i64} {
  func.func @_focal_loss_kernel(%arg0: i32, %arg1: memref<8x128xf32, #tpu.memory_space<vmem>>, %arg2: memref<8x128xf32, #tpu.memory_space<vmem>>, %arg3: memref<8x128xf32, #tpu.memory_space<vmem>>) attributes {dimension_semantics = [#tpu.dimension_semantics<parallel>], iteration_bounds = array<i64: 2>, scalar_prefetch = 0 : i64, scratch_operands = 0 : i64, tpu.core_type = #tpu.core_type<tc>, window_params = [{transform_indices = @transform_0, window_bounds = array<i64: 8, 128>}, {transform_indices = @transform_1, window_bounds = array<i64: 8, 128>}, {transform_indices = @transform_2, window_bounds = array<i64: 8, 128>}]} {
    %c0 = arith.constant 0 : index
    %c0_0 = arith.constant 0 : index
    %0 = vector.load %arg1[%c0, %c0_0] : memref<8x128xf32, #tpu.memory_space<vmem>>, vector<8x128xf32>
    %c0_1 = arith.constant 0 : index
    %c0_2 = arith.constant 0 : index
    %1 = vector.load %arg2[%c0_1, %c0_2] : memref<8x128xf32, #tpu.memory_space<vmem>>, vector<8x128xf32>
    %2 = math.absf %0 : vector<8x128xf32>
    %cst = arith.constant 0.000000e+00 : f32
    %3 = vector.broadcast %cst : f32 to vector<8x128xf32>
    %4 = arith.subf %3, %2 : vector<8x128xf32>
    %5 = math.exp %4 : vector<8x128xf32>
    %6 = math.log1p %5 : vector<8x128xf32>
    %cst_3 = arith.constant 0.000000e+00 : f32
    %7 = vector.broadcast %cst_3 : f32 to vector<8x128xf32>
    %8 = arith.cmpf oge, %0, %7 : vector<8x128xf32>
    %cst_4 = arith.constant 1.000000e+00 : f32
    %9 = vector.broadcast %cst_4 : f32 to vector<8x128xf32>
    %10 = arith.select %8, %9, %5 : vector<8x128xi1>, vector<8x128xf32>
    %cst_5 = arith.constant 1.000000e+00 : f32
    %11 = vector.broadcast %cst_5 : f32 to vector<8x128xf32>
    %12 = arith.addf %11, %5 : vector<8x128xf32>
    %13 = arith.divf %10, %12 : vector<8x128xf32>
    %cst_6 = arith.constant 0.000000e+00 : f32
    %14 = vector.broadcast %cst_6 : f32 to vector<8x128xf32>
    %15 = arith.maximumf %0, %14 : vector<8x128xf32>
    %16 = arith.mulf %0, %1 : vector<8x128xf32>
    %17 = arith.subf %15, %16 : vector<8x128xf32>
    %18 = arith.addf %17, %6 : vector<8x128xf32>
    %cst_7 = arith.constant 2.500000e-01 : f32
    %19 = vector.broadcast %cst_7 : f32 to vector<8x128xf32>
    %20 = arith.mulf %1, %19 : vector<8x128xf32>
    %cst_8 = arith.constant 1.000000e+00 : f32
    %21 = vector.broadcast %cst_8 : f32 to vector<8x128xf32>
    %22 = arith.subf %21, %1 : vector<8x128xf32>
    %cst_9 = arith.constant 7.500000e-01 : f32
    %23 = vector.broadcast %cst_9 : f32 to vector<8x128xf32>
    %24 = arith.mulf %22, %23 : vector<8x128xf32>
    %25 = arith.addf %20, %24 : vector<8x128xf32>
    %cst_10 = arith.constant 1.000000e+00 : f32
    %26 = vector.broadcast %cst_10 : f32 to vector<8x128xf32>
    %27 = arith.cmpf oeq, %1, %26 : vector<8x128xf32>
    %cst_11 = arith.constant 1.000000e+00 : f32
    %28 = vector.broadcast %cst_11 : f32 to vector<8x128xf32>
    %29 = arith.subf %28, %13 : vector<8x128xf32>
    %30 = arith.select %27, %13, %29 : vector<8x128xi1>, vector<8x128xf32>
    %cst_12 = arith.constant 1.000000e+00 : f32
    %31 = vector.broadcast %cst_12 : f32 to vector<8x128xf32>
    %32 = arith.subf %31, %30 : vector<8x128xf32>
    %33 = arith.mulf %32, %32 : vector<8x128xf32>
    %34 = arith.mulf %25, %33 : vector<8x128xf32>
    %35 = arith.mulf %34, %18 : vector<8x128xf32>
    %c0_13 = arith.constant 0 : index
    %c0_14 = arith.constant 0 : index
    %36 = vector.load %arg3[%c0_13, %c0_14] : memref<8x128xf32, #tpu.memory_space<vmem>>, vector<8x128xf32>
    tpu.vector_store %arg3[%c0_13, %c0_14], %35 {strides = array<i32>} : memref<8x128xf32, #tpu.memory_space<vmem>>, vector<8x128xf32>,
    return
  }
  func.func @transform_0(%arg0: i32) -> (i32, i32) {
    %c0_i32 = arith.constant 0 : i32
    %c0_i32_0 = arith.constant 0 : i32
    return %arg0, %c0_i32 : i32, i32
  }
  func.func @transform_1(%arg0: i32) -> (i32, i32) {
    %c0_i32 = arith.constant 0 : i32
    %c0_i32_0 = arith.constant 0 : i32
    return %arg0, %c0_i32 : i32, i32
  }
  func.func @transform_2(%arg0: i32) -> (i32, i32) {
    %c0_i32 = arith.constant 0 : i32
    %c0_i32_0 = arith.constant 0 : i32
    return %arg0, %c0_i32 : i32, i32
  }
}

</mosaic_0001>

<llo_original>
// kernel: tpu_custom_call.1
$region0: #{tpu_custom_call.1}
  #allocation0 [shape = 'u32[]', space=smem, size = 0x4, offset = 0x4, fixed_abs, tag = 'smem constant byte address 0x4 - core index']
  #allocation1 [shape = 'u32[144,128]{1,0:T(1,128)}', space=vmem, size = 0x12000, scoped, tag = 'internal scratch']
  %s0 = inlined_call_operand.hbm [shape: f32[16,128], index: 0, kind: input, shape index: {}]
  %s1 = inlined_call_operand.hbm [shape: f32[16,128], index: 1, kind: input, shape index: {}]
  %s2 = inlined_call_operand.hbm [shape: f32[16,128], index: 2, kind: output, shape index: {}]
  %s3 = sld [smem:[#allocation0]]
  $region49: #{tpu_custom_call.1} parent=0
    _
  %s5 = ssub.s32 1, %s3
  %s6 = scalar_select 0, %s5, %s3
  $region1: #{tpu_custom_call.1} parent=0
    #allocation2 [shape = 'u8[8192]{0}', space=vmem, size = 0x2000, scoped, tag = 'input window, operand 0']
    #allocation3 [shape = 's32[2]{0}', space=sflag, size = 0x8, scoped, tag = 'scoped memory for tpu_custom_call.1']
    #allocation4 [shape = 's32[2]{0}', space=sflag, size = 0x8, scoped, tag = 'scoped memory for tpu_custom_call.1']
    #allocation5 [shape = 'u8[8192]{0}', space=vmem, size = 0x2000, scoped, tag = 'input window, operand 1']
    #allocation6 [shape = 's32[2]{0}', space=sflag, size = 0x8, scoped, tag = 'scoped memory for tpu_custom_call.1']
    #allocation7 [shape = 'u8[8192]{0}', space=vmem, size = 0x2000, scoped, tag = 'output window, operand 0']
    %7 = vsyncpa [#allocation3], 0
    %s8 = scalar_lea.sflag [#allocation3], 1
    %9 = vsyncpa %s8, 0
    %10 = vsyncpa [#allocation6], 0
    %s11 = scalar_lea.sflag [#allocation6], 1
    %12 = vsyncpa %s11, 0
    %13 = vsyncpa [#allocation4], 0
    %s14 = scalar_lea.sflag [#allocation4], 1
    %15 = vsyncpa %s14, 0
    loop: start=0, step=1, limit=4
    $region2: #{tpu_custom_call.1} parent=1 // loop_pre_header
      _
    $region3: #{tpu_custom_call.1} parent=1 // loop_header
      %s17 = sphi 0, %s21
      %p18 = scmp.ge.s32.totalorder %s17, 4
      %s27 = sphi 0, %s29
      %s30 = sphi 0, %s27
      %s31 = sphi 0, %s30
      %s47 = sphi 0, %s31
      %s53 = sphi 0, %s55
      %s56 = sphi 0, %s53
      %s57 = sphi 0, %s56
      %s73 = sphi 0, %s57
      %s79 = sphi 0, %s81
      %s82 = sphi 0, %s79
      %s83 = sphi 0, %s82
      %s99 = sphi 0, %s83
    $region4: #{tpu_custom_call.1} parent=1 // loop_header_branch
      %20 = sbr.rel (%p18) target = $region8
    $region5: #{tpu_custom_call.1} parent=1 // loop_body
      %s22 = ssub.s32 %s17, 1
      %s23 = ssub.s32 %s17, 2
      %s24 = sadd.s32 %s17, 1
      %s25 = ssub.s32 %s17, %s24
      %p26 = scmp.eq.s32.totalorder %s25, 0
      %s28 = sadd.s32 %s27, 1
      %s29 = scalar_select %p26, %s27, %s28
      %p32 = pneg %p26
      %p33 = scmp.eq.s32.totalorder %s17, 1
      %p34 = por %p32, %p33
      %p35 = scmp.ne.s32.totalorder %s27, %s30
      %p36 = scmp.eq.s32.totalorder %s17, 0
      %p37 = por %p35, %p36
      %p38 = scmp.ne.s32.totalorder %s27, %s30
      %p39 = scmp.eq.s32.totalorder %s22, 1
      %p40 = por %p38, %p39
      %p41 = scmp.ne.s32.totalorder %s30, %s31
      %p42 = scmp.eq.s32.totalorder %s22, 0
      %p43 = por %p41, %p42
      %p44 = scmp.ne.s32.totalorder %s30, %s31
      %p45 = scmp.eq.s32.totalorder %s23, 1
      %p46 = por %p44, %p45
      %p48 = scmp.ne.s32.totalorder %s31, %s47
      %p49 = scmp.eq.s32.totalorder %s23, 0
      %p50 = por %p48, %p49
      %s51 = ssub.s32 %s17, %s24
      %p52 = scmp.eq.s32.totalorder %s51, 0
      %s54 = sadd.s32 %s53, 1
      %s55 = scalar_select %p52, %s53, %s54
      %p58 = pneg %p52
      %p59 = scmp.eq.s32.totalorder %s17, 1
      %p60 = por %p58, %p59
      %p61 = scmp.ne.s32.totalorder %s53, %s56
      %p62 = scmp.eq.s32.totalorder %s17, 0
      %p63 = por %p61, %p62
      %p64 = scmp.ne.s32.totalorder %s53, %s56
      %p65 = scmp.eq.s32.totalorder %s22, 1
      %p66 = por %p64, %p65
      %p67 = scmp.ne.s32.totalorder %s56, %s57
      %p68 = scmp.eq.s32.totalorder %s22, 0
      %p69 = por %p67, %p68
      %p70 = scmp.ne.s32.totalorder %s56, %s57
      %p71 = scmp.eq.s32.totalorder %s23, 1
      %p72 = por %p70, %p71
      %p74 = scmp.ne.s32.totalorder %s57, %s73
      %p75 = scmp.eq.s32.totalorder %s23, 0
      %p76 = por %p74, %p75
      %s77 = ssub.s32 %s17, %s24
      %p78 = scmp.eq.s32.totalorder %s77, 0
      %s80 = sadd.s32 %s79, 1
      %s81 = scalar_select %p78, %s79, %s80
      %p84 = pneg %p78
      %p85 = scmp.eq.s32.totalorder %s17, 1
      %p86 = por %p84, %p85
      %p87 = scmp.ne.s32.totalorder %s79, %s82
      %p88 = scmp.eq.s32.totalorder %s17, 0
      %p89 = por %p87, %p88
      %p90 = scmp.ne.s32.totalorder %s79, %s82
      %p91 = scmp.eq.s32.totalorder %s22, 1
      %p92 = por %p90, %p91
      %p93 = scmp.ne.s32.totalorder %s82, %s83
      %p94 = scmp.eq.s32.totalorder %s22, 0
      %p95 = por %p93, %p94
      %p96 = scmp.ne.s32.totalorder %s82, %s83
      %p97 = scmp.eq.s32.totalorder %s23, 1
      %p98 = por %p96, %p97
      %p100 = scmp.ne.s32.totalorder %s83, %s99
      %p101 = scmp.eq.s32.totalorder %s23, 0
      %p102 = por %p100, %p101
      %p103 = scmp.le.s32.totalorder 1, %s17
      %p104 = scmp.lt.s32.totalorder %s17, 3
      %p105 = pnand %p103, %p104
      %p106 = pneg %p105
      // Predicated region
      $region9: #{tpu_custom_call.1} parent=5 // pred_check
        _
      $region10: #{tpu_custom_call.1} parent=5 // pred_check_branch
        %108 = sbr.rel (%p105) target = $region12
      $region11: #{tpu_custom_call.1} parent=5 // pred_region
        %s109 = ssub.s32 %s17, 1
      $region12: #{tpu_custom_call.1} parent=5 // pred_fallthru
        _
      %p110 = scmp.lt.s32.totalorder %s17, 2
      // Predicated region
      $region13: #{tpu_custom_call.1} parent=5 // pred_check
        %p111 = pneg %p110
      $region14: #{tpu_custom_call.1} parent=5 // pred_check_branch
        %113 = sbr.rel (%p111) target = $region16
      $region15: #{tpu_custom_call.1} parent=5 // pred_region
        // Predicated region
        $region17: #{tpu_custom_call.1} parent=15 // pred_check
          %p114 = pneg %p37
        $region18: #{tpu_custom_call.1} parent=15 // pred_check_branch
          %116 = sbr.rel (%p114) target = $region20
        $region19: #{tpu_custom_call.1} parent=15 // pred_region
          %s117 = sand.u32 %s27, 1
          %s118 = scalar_lea.sflag [#allocation3], %s117
          %s119 = sand.u32 %s27, 1
          %s120 = smul.addr %s119, 8
          %s121 = scalar_lea.vmem [#allocation2], %s120
          %s123 = ssub.s32 128, 128
          %124 = vsyncadd %s118, %s123
          %s125 = smul.addr %s17, 128
          %s126 = scalar_lea.hbm %s0, %s125
          %s128 = sshll.u32 %s121, 4
          %s129 = int_to_ptr.vmem [resolvable:$true] %s128
          %131 = dma.hbm_to_vmem [thread:$0]  %s126, 128, %s129, %s118
        $region20: #{tpu_custom_call.1} parent=15 // pred_fallthru
          _
        // Predicated region
        $region21: #{tpu_custom_call.1} parent=15 // pred_check
          %p132 = pneg %p63
        $region22: #{tpu_custom_call.1} parent=15 // pred_check_branch
          %134 = sbr.rel (%p132) target = $region24
        $region23: #{tpu_custom_call.1} parent=15 // pred_region
          %s135 = sand.u32 %s53, 1
          %s136 = scalar_lea.sflag [#allocation6], %s135
          %s137 = sand.u32 %s53, 1
          %s138 = smul.addr %s137, 8
          %s139 = scalar_lea.vmem [#allocation5], %s138
          %s141 = ssub.s32 128, 128
          %142 = vsyncadd %s136, %s141
          %s143 = smul.addr %s17, 128
          %s144 = scalar_lea.hbm %s1, %s143
          %s146 = sshll.u32 %s139, 4
          %s147 = int_to_ptr.vmem [resolvable:$true] %s146
          %149 = dma.hbm_to_vmem [thread:$0]  %s144, 128, %s147, %s136
        $region24: #{tpu_custom_call.1} parent=15 // pred_fallthru
          _
      $region16: #{tpu_custom_call.1} parent=5 // pred_fallthru
        _
      %p150 = scmp.le.s32.totalorder 1, %s17
      %p151 = scmp.lt.s32.totalorder %s17, 3
      %p152 = pnand %p150, %p151
      %p153 = pneg %p152
      // Predicated region
      $region25: #{tpu_custom_call.1} parent=5 // pred_check
        _
      $region26: #{tpu_custom_call.1} parent=5 // pred_check_branch
        %155 = sbr.rel (%p152) target = $region28
      $region27: #{tpu_custom_call.1} parent=5 // pred_region
        %s156 = ssub.s32 %s17, 1
        %s157 = sand.u32 %s30, 1
        %s158 = scalar_lea.sflag [#allocation3], %s157
        %s159 = sand.u32 %s30, 1
        %s160 = smul.addr %s159, 8
        %s161 = scalar_lea.vmem [#allocation2], %s160
        // Predicated region
        $region29: #{tpu_custom_call.1} parent=27 // pred_check
          %p162 = pneg %p43
        $region30: #{tpu_custom_call.1} parent=27 // pred_check_branch
          %164 = sbr.rel (%p162) target = $region32
        $region31: #{tpu_custom_call.1} parent=27 // pred_region
          %165 = dma.done %s158, 128
        $region32: #{tpu_custom_call.1} parent=27 // pred_fallthru
          _
        %s166 = sand.u32 %s56, 1
        %s167 = scalar_lea.sflag [#allocation6], %s166
        %s168 = sand.u32 %s56, 1
        %s169 = smul.addr %s168, 8
        %s170 = scalar_lea.vmem [#allocation5], %s169
        // Predicated region
        $region33: #{tpu_custom_call.1} parent=27 // pred_check
          %p171 = pneg %p69
        $region34: #{tpu_custom_call.1} parent=27 // pred_check_branch
          %173 = sbr.rel (%p171) target = $region36
        $region35: #{tpu_custom_call.1} parent=27 // pred_region
          %174 = dma.done %s167, 128
        $region36: #{tpu_custom_call.1} parent=27 // pred_fallthru
          _
        %s175 = sand.u32 %s30, 1
        %s176 = scalar_lea.sflag [#allocation3], %s175
        %s177 = sand.u32 %s30, 1
        %s178 = smul.addr %s177, 8
        %s179 = scalar_lea.vmem [#allocation2], %s178
        %p180 = pneg %p43
        %p181 = pneg %p40
        %s182 = sand.u32 %s56, 1
        %s183 = scalar_lea.sflag [#allocation6], %s182
        %s184 = sand.u32 %s56, 1
        %s185 = smul.addr %s184, 8
        %s186 = scalar_lea.vmem [#allocation5], %s185
        %p187 = pneg %p69
        %p188 = pneg %p66
        %p189 = pneg %p95
        %p190 = pneg %p92
        %s191 = sand.u32 %s82, 1
        %s192 = scalar_lea.sflag [#allocation4], %s191
        %s193 = sand.u32 %s82, 1
        %s194 = smul.addr %s193, 8
        %s195 = scalar_lea.vmem [#allocation7], %s194
        %v196 = vld [vmem:[%s161] sm:$0xff]
        %v197 = vld [vmem:[%s170] sm:$0xff]
        %v198 = vand.u32 2147483647, %v196
        %v199 = vsub.f32 0.0, %v198
        %v200 = vmul.f32 %v199, 1.442695
        %v201 = vpow.pop %v200
        %v202 = vadd.f32 %v201, 1.0
        %v203 = vlog2.pop %v202
        %v204 = vmul.f32 %v203, 0.6931472
        %v205 = vmul.f32 -0.5, %v201
        %v206 = vadd.f32 %v205, 1.0
        %v207 = vmul.f32 %v206, %v201
        %v208 = vand.u32 2147483647, %v201
        %vm209 = vcmp.lt.f32.partialorder %v208, 0.0004427343
        %v210 = vsel %vm209, %v207, %v204
        %vm211 = vcmp.ge.f32.partialorder %v196, 0.0
        %v212 = vsel %vm211, 1.0, %v201
        %v213 = vadd.f32 %v201, 1.0
        %v214 = vrcp.pop %v213
        %v215 = vmul.f32 %v212, %v214
        %v216 = vmax.f32 %v196, 0.0
        %v217 = vmul.f32 %v196, %v197
        %v218 = vsub.f32 %v216, %v217
        %v219 = vadd.f32 %v218, %v210
        %v220 = vmul.f32 %v197, 0.25
        %v221 = vsub.f32 1.0, %v197
        %v222 = vmul.f32 %v221, 0.75
        %v223 = vadd.f32 %v220, %v222
        %vm224 = vcmp.eq.f32.partialorder %v197, 1.0
        %v225 = vsub.f32 1.0, %v215
        %v226 = vsel %vm224, %v215, %v225
        %v227 = vsub.f32 1.0, %v226
        %v228 = vmul.f32 %v227, %v227
        %v229 = vmul.f32 %v223, %v228
        %v230 = vmul.f32 %v229, %v219
        %231 = vst [vmem:[%s195] sm:$0xff] %v230
        %s232 = sand.u32 %s82, 1
        %s233 = scalar_lea.sflag [#allocation4], %s232
        %s234 = sand.u32 %s82, 1
        %s235 = smul.addr %s234, 8
        %s236 = scalar_lea.vmem [#allocation7], %s235
        // Predicated region
        $region37: #{tpu_custom_call.1} parent=27 // pred_check
          %p237 = pneg %p92
        $region38: #{tpu_custom_call.1} parent=27 // pred_check_branch
          %239 = sbr.rel (%p237) target = $region40
        $region39: #{tpu_custom_call.1} parent=27 // pred_region
          %s241 = ssub.s32 128, 128
          %242 = vsyncadd %s233, %s241
          %s243 = smul.addr %s22, 128
          %s244 = scalar_lea.hbm %s2, %s243
          %s246 = sshll.u32 %s236, 4
          %s247 = int_to_ptr.vmem [resolvable:$true] %s246
          %249 = dma.vmem_to_hbm [thread:$0]  %s247, 128, %s244, %s233
        $region40: #{tpu_custom_call.1} parent=27 // pred_fallthru
          _
      $region28: #{tpu_custom_call.1} parent=5 // pred_fallthru
        _
      %p250 = scmp.le.s32.totalorder 2, %s17
      // Predicated region
      $region41: #{tpu_custom_call.1} parent=5 // pred_check
        %p251 = pneg %p250
      $region42: #{tpu_custom_call.1} parent=5 // pred_check_branch
        %253 = sbr.rel (%p251) target = $region44
      $region43: #{tpu_custom_call.1} parent=5 // pred_region
        %s254 = ssub.s32 %s17, 2
        // Predicated region
        $region45: #{tpu_custom_call.1} parent=43 // pred_check
          %p255 = pneg %p98
        $region46: #{tpu_custom_call.1} parent=43 // pred_check_branch
          %257 = sbr.rel (%p255) target = $region48
        $region47: #{tpu_custom_call.1} parent=43 // pred_region
          %s258 = sand.u32 %s83, 1
          %s259 = scalar_lea.sflag [#allocation4], %s258
          %s260 = sand.u32 %s83, 1
          %s261 = smul.addr %s260, 8
          %s262 = scalar_lea.vmem [#allocation7], %s261
          %263 = dma.done %s259, 128
        $region48: #{tpu_custom_call.1} parent=43 // pred_fallthru
          _
      $region44: #{tpu_custom_call.1} parent=5 // pred_fallthru
        _
    $region6: #{tpu_custom_call.1} parent=1 // loop_footer
      %s21 = sadd.s32 1, %s17
    $region7: #{tpu_custom_call.1} parent=1 // loop_footer_branch
      %16 = sbr.rel target = $region3
    $region8: #{tpu_custom_call.1} parent=1 // loop_exit
      _
    %264 = vsyncpa [#allocation3], 1
    %s265 = scalar_lea.sflag [#allocation3], 1
    %266 = vsyncpa %s265, 1
    %267 = vsyncpa [#allocation6], 1
    %s268 = scalar_lea.sflag [#allocation6], 1
    %269 = vsyncpa %s268, 1
    %270 = vsyncpa [#allocation4], 1
    %s271 = scalar_lea.sflag [#allocation4], 1
    %272 = vsyncpa %s271, 1

</llo_original>
